<compile_context>
chip_gen: v7x
topology: tpu7x:2x2x1
jax: 0.10.0
libtpu: 0.0.40
codegen_flags: <defaults>
</compile_context>

<pallas_src>
import functools

import jax
import jax.numpy as jnp
from jax.experimental import pallas as pl
from jax.experimental.pallas import tpu as pltpu

EPS = 1e-5  # nn.BatchNorm1d default


def _activation(name, x, approx_gelu=False):
    if name == 'relu':
        return jnp.maximum(x, 0.0)
    elif name == 'leaky_relu':
        return jnp.where(x >= 0, x, 0.01 * x)
    elif name == 'gelu':
        # exact erf matches PyTorch nn.GELU(); on v5e prefer approx_gelu=True
        # (tanh approximation, much cheaper on the single EUP unit).
        return jax.nn.gelu(x, approximate=approx_gelu)
    elif name == 'swish':
        return x * jax.nn.sigmoid(x)
    elif name == 'elu':
        return jnp.where(x >= 0, x, jnp.exp(x) - 1.0)
    else:
        raise ValueError(name)


def _batchnorm(y, gamma, beta, inv_nl):
    # y: (C, L*N) f32; gamma/beta: (C, 1).  Training-mode BN over all N*L
    # positions, biased variance.  Two-pass stats (no E[x^2]-mean^2
    # cancellation risk) + a single fused scale/shift FMA normalize pass.
    mean = jnp.sum(y, axis=1, keepdims=True) * inv_nl
    d = y - mean
    var = jnp.sum(d * d, axis=1, keepdims=True) * inv_nl
    scale = gamma * jax.lax.rsqrt(var + EPS)          # (C, 1)
    shift = beta - mean * scale                       # (C, 1)
    return y * scale + shift


def conv1d_block_kernel(*refs, skip, activation, approx_gelu, inv_nl,
                        mm_dtype, N, L, K, pad):
    if skip:
        (rhs1_ref, w1_ref, g1_ref, be1_ref, w2_ref, g2_ref, be2_ref,
         xc_ref, wds_ref, gds_ref, beds_ref, o_ref) = refs
    else:
        (rhs1_ref, w1_ref, g1_ref, be1_ref, w2_ref, g2_ref, be2_ref,
         o_ref) = refs

    LN = L * N

    # ---- conv1: one fused MXU matmul over the (tap, channel) contraction ---
    # bias b1 dropped (exactly cancelled by the BN mean subtraction below).
    y1 = jnp.dot(w1_ref[...], rhs1_ref[...],
                 preferred_element_type=jnp.float32)           # (C_out, L*N) f32
    h = _batchnorm(y1, g1_ref[...], be1_ref[...], inv_nl)
    h = _activation(activation, h, approx_gelu)
    # Dropout1d(p=0.0) is the identity.

    # ---- replicate-pad the intermediate along l as a value (lane order is
    # (l, n): left/right pads are copies of the first / last N columns). -----
    h_pad = jnp.concatenate(
        [h[:, :N]] * pad + [h] + [h[:, (L - 1) * N:]] * pad, axis=1)

    # ---- conv2: K accumulating MXU dots over tap windows (no (K*C_out, L*N)
    # materialized slab -> ~Kx lower live-value / spill footprint). Each tap
    # slice is cast to the matmul dtype right at the dot; bias b2 dropped. ---
    y2 = jnp.dot(w2_ref[0], h_pad[:, :LN].astype(mm_dtype),
                 preferred_element_type=jnp.float32)
    for t in range(1, K):
        y2 = y2 + jnp.dot(w2_ref[t],
                          h_pad[:, t * N:t * N + LN].astype(mm_dtype),
                          preferred_element_type=jnp.float32)
    out = _batchnorm(y2, g2_ref[...], be2_ref[...], inv_nl)

    # ---- optional skip / downsample path (1x1 conv, no bias, + BN) ----------
    if skip:
        ds = jnp.dot(wds_ref[...], xc_ref[...],
                     preferred_element_type=jnp.float32)
        out = out + _batchnorm(ds, gds_ref[...], beds_ref[...], inv_nl)

    o_ref[...] = _activation(activation, out, approx_gelu)


def conv1d_block(x, params, *, skip_connection=False, activation='relu',
                 kernel_size=5, padding=None, approx_gelu=False,
                 matmul_dtype=jnp.bfloat16):
    """x: (N, C_in, L) float32.  Returns (N, C_out, L) float32."""
    (w1, _b1, g1, be1, w2, _b2, g2, be2, wds, gds, beds) = params
    N, C_in, L = x.shape
    C_out = w1.shape[0]
    K = kernel_size
    pad = (K // 2) if padding is None else padding
    mm = jnp.dtype(matmul_dtype)

    x = x.astype(jnp.float32)

    # Lane-dense im2col of the replicate-padded input (plain-JAX glue):
    # rhs1[t*C_in + c, l*N + n] = x_pad[n, c, l + t].  Cast to `mm` (bf16 by
    # default): halves HBM->VMEM DMA bytes and feeds the MXU natively.
    x_pad = jnp.pad(x, ((0, 0), (0, 0), (pad, pad)), mode='edge')
    taps = jnp.stack([x_pad[:, :, t:t + L] for t in range(K)], axis=0)
    rhs1 = jnp.transpose(taps, (0, 2, 3, 1)).reshape(K * C_in, L * N).astype(mm)

    # conv1 weight (C_out, C_in, K) -> (C_out, K*C_in), columns matching rhs1.
    w1_flat = jnp.transpose(w1, (0, 2, 1)).reshape(C_out, K * C_in).astype(mm)
    # conv2 weight as per-tap matrices (K, C_out, C_out): indexed on the
    # leading (untiled) dim in-kernel, one matrix per accumulating dot.
    w2_taps = jnp.transpose(w2, (2, 0, 1)).astype(mm)

    def col(p):  # per-channel BN params -> (C_out, 1) f32 for broadcasting
        return p.reshape(C_out, 1).astype(jnp.float32)

    # b1/b2 intentionally not passed (no-ops before training-mode BN).
    args = [rhs1, w1_flat, col(g1), col(be1), w2_taps, col(g2), col(be2)]
    if skip_connection:
        # unshifted lane-dense input for the 1x1 downsample conv
        x_center = jnp.transpose(x, (1, 2, 0)).reshape(C_in, L * N).astype(mm)
        args += [x_center, wds[:, :, 0].astype(mm), col(gds), col(beds)]

    kernel = functools.partial(
        conv1d_block_kernel, skip=skip_connection, activation=activation,
        approx_gelu=approx_gelu, inv_nl=1.0 / float(N * L), mm_dtype=mm,
        N=N, L=L, K=K, pad=pad)

    ln = L * N
    in_bytes = sum(int(a.size) * a.dtype.itemsize for a in args)
    out_bytes = C_out * ln * 4
    flops = (2 * ln * C_out * (K * C_in + K * C_out
                               + (C_in if skip_connection else 0))
             + 12 * C_out * ln)
    transcendentals = (3 if skip_connection else 2) * C_out
    if activation in ('gelu', 'swish', 'elu'):
        transcendentals += 2 * C_out * ln

    vmem = pl.BlockSpec(memory_space=pltpu.MemorySpace.VMEM)
    out2 = pl.pallas_call(
        kernel,
        out_shape=jax.ShapeDtypeStruct((C_out, ln), jnp.float32),
        in_specs=[vmem] * len(args),
        out_specs=vmem,
        compiler_params=pltpu.CompilerParams(
            vmem_limit_bytes=int(min(96 << 20,
                                     max(4 << 20, 8 * (in_bytes + out_bytes))))),
        cost_estimate=pl.CostEstimate(
            flops=int(flops), transcendentals=int(transcendentals),
            bytes_accessed=int(in_bytes + out_bytes)),
    )(*args)

    # (C_out, L*N) lane-dense result -> (N, C_out, L)
    return jnp.transpose(out2.reshape(C_out, L, N), (2, 0, 1))


# ----------------------- model-level forward (glue) -----------------------
def gem_pool1d(x, *, kernel_size=3, p=3.0, eps=1e-6):
    # TODO(synk): GeM class definition is not included in the spec; this assumes the
    # standard GeM-1D (clamp(min=eps) -> x**p -> avg_pool1d(k, stride=k) -> **(1/p)).
    N, C, L = x.shape
    L_out = L // kernel_size
    y = jnp.maximum(x, eps) ** p
    y = y[:, :, :L_out * kernel_size].reshape(N, C, L_out, kernel_size).mean(-1)
    return y ** (1.0 / p)


def gem_model_forward(x_nlc, stage_params, *, activation='relu',
                      kernel_size=5, gem_kernel_size=3,
                      matmul_dtype=jnp.bfloat16):
    """x_nlc: (N, L, C_in). Mirrors GemVeryLightCNN1DWithDepthMaxPoolModel.forward.

    Note: like the PyTorch module, the depth max-pool (stack over hidden
    states) only type-checks when every stage produces the same (C, L) shape,
    i.e. effectively a single stage with these GeM strides.
    """
    x = jnp.transpose(x_nlc, (0, 2, 1))                 # torch.transpose(x, 1, 2)
    hidden = []
    for params in stage_params:
        x = conv1d_block(x, params, skip_connection=True, activation=activation,
                         kernel_size=kernel_size, padding=kernel_size // 2,
                         matmul_dtype=matmul_dtype)
        x = gem_pool1d(x, kernel_size=gem_kernel_size)
        hidden.append(x)
    x_max = jnp.max(jnp.stack(hidden, axis=0), axis=0)  # depth max-pool
    return jnp.transpose(x + x_max, (0, 2, 1))


# ------------------------- pure-JAX block reference -------------------------
def conv1d_block_ref(x, params, *, skip_connection, activation,
                     matmul_dtype=jnp.float32):
    (w1, b1, g1, be1, w2, b2, g2, be2, wds, gds, beds) = params
    pad = w1.shape[-1] // 2
    md = jnp.dtype(matmul_dtype)

    def conv1d_rep(x, w, b, pad):
        xp = jnp.pad(x, ((0, 0), (0, 0), (pad, pad)), mode='edge').astype(md)
        K = w.shape[-1]
        L = x.shape[-1]
        wm = w.astype(md)
        y = sum(jnp.einsum('oc,ncl->nol', wm[:, :, t], xp[:, :, t:t + L],
                           preferred_element_type=jnp.float32)
                for t in range(K))
        return y + (b[None, :, None] if b is not None else 0.0)

    def bn(y, g, be):
        m = y.mean(axis=(0, 2), keepdims=True)
        v = ((y - m) ** 2).mean(axis=(0, 2), keepdims=True)
        return (y - m) / jnp.sqrt(v + EPS) * g[None, :, None] + be[None, :, None]

    act = lambda z: _activation(activation, z)
    h = act(bn(conv1d_rep(x, w1, b1, pad), g1, be1))
    out = bn(conv1d_rep(h, w2, b2, pad), g2, be2)
    if skip_connection:
        ds = jnp.einsum('oc,ncl->nol', wds[:, :, 0].astype(md), x.astype(md),
                        preferred_element_type=jnp.float32)
        out = out + bn(ds, gds, beds)
    return act(out)


if __name__ == "__main__":
    N, C_in, C_out, L, K = 2, 4, 8, 16, 5

    key = jax.random.PRNGKey(0)
    ks = jax.random.split(key, 12)
    params = (
        0.1 * jax.random.normal(ks[0], (C_out, C_in, K), jnp.float32),   # w1
        0.1 * jax.random.normal(ks[1], (C_out,), jnp.float32),           # b1
        1.0 + 0.1 * jax.random.normal(ks[2], (C_out,), jnp.float32),     # gamma1
        0.1 * jax.random.normal(ks[3], (C_out,), jnp.float32),           # beta1
        0.1 * jax.random.normal(ks[4], (C_out, C_out, K), jnp.float32),  # w2
        0.1 * jax.random.normal(ks[5], (C_out,), jnp.float32),           # b2
        1.0 + 0.1 * jax.random.normal(ks[6], (C_out,), jnp.float32),     # gamma2
        0.1 * jax.random.normal(ks[7], (C_out,), jnp.float32),           # beta2
        0.1 * jax.random.normal(ks[8], (C_out, C_in, 1), jnp.float32),   # w_ds
        1.0 + 0.1 * jax.random.normal(ks[9], (C_out,), jnp.float32),     # gamma_ds
        0.1 * jax.random.normal(ks[10], (C_out,), jnp.float32),          # beta_ds
    )
    x_ncl = jax.random.normal(ks[11], (N, C_in, L), jnp.float32)

    for skip in (False, True):
        # (a) exactness of the fused structure (bias drop + fused BN) in f32.
        out_f32 = jax.block_until_ready(
            conv1d_block(x_ncl, params, skip_connection=skip, activation='relu',
                         matmul_dtype=jnp.float32))
        ref_f32 = conv1d_block_ref(x_ncl, params, skip_connection=skip,
                                   activation='relu')
        assert out_f32.shape == (N, C_out, L)
        assert jnp.allclose(out_f32, ref_f32, rtol=1e-4, atol=1e-4), (
            f"f32 mismatch (skip={skip}): {jnp.max(jnp.abs(out_f32 - ref_f32))}")

        # (b) default bf16-MXU fast path vs a bf16-operand reference.
        out_bf = jax.block_until_ready(
            conv1d_block(x_ncl, params, skip_connection=skip, activation='relu'))
        ref_bf = conv1d_block_ref(x_ncl, params, skip_connection=skip,
                                  activation='relu', matmul_dtype=jnp.bfloat16)
        assert jnp.allclose(out_bf, ref_bf, rtol=3e-3, atol=3e-3), (
            f"bf16 mismatch (skip={skip}): {jnp.max(jnp.abs(out_bf - ref_bf))}")
        # bf16 drift vs the exact f32 model stays bounded.
        assert jnp.allclose(out_bf, ref_f32, rtol=1e-1, atol=1e-1), (
            f"bf16 drift too large (skip={skip})")

    # Full model forward: single stage channels=[(4, 8)], skip_connection=True.
    x_nlc = jnp.transpose(x_ncl, (0, 2, 1))             # model input is (N, L, C)
    outs = jax.block_until_ready(
        gem_model_forward(x_nlc, [params], activation='relu',
                          kernel_size=K, gem_kernel_size=3))
    assert outs.shape == (N, L // 3, C_out), outs.shape
    assert bool(jnp.all(jnp.isfinite(outs)))

    print("KERNEL_OK")
</pallas_src>

<mosaic_0001>
module attributes {stable_mosaic.version = 11 : i64} {
  func.func @conv1d_block_kernel(%arg0: memref<20x32xf32, #tpu.memory_space<vmem>>, %arg1: memref<8x20xf32, #tpu.memory_space<vmem>>, %arg2: memref<8x1xf32, #tpu.memory_space<vmem>>, %arg3: memref<8x1xf32, #tpu.memory_space<vmem>>, %arg4: memref<5x8x8xf32, #tpu.memory_space<vmem>>, %arg5: memref<8x1xf32, #tpu.memory_space<vmem>>, %arg6: memref<8x1xf32, #tpu.memory_space<vmem>>, %arg7: memref<8x32xf32, #tpu.memory_space<vmem>>) attributes {dimension_semantics = [], scalar_prefetch = 0 : i64, scratch_operands = 0 : i64, tpu.core_type = #tpu.core_type<tc>} {
    %c0 = arith.constant 0 : index
    %c0_0 = arith.constant 0 : index
    %0 = vector.load %arg1[%c0, %c0_0] : memref<8x20xf32, #tpu.memory_space<vmem>>, vector<8x20xf32>
    %c0_1 = arith.constant 0 : index
    %c0_2 = arith.constant 0 : index
    %1 = vector.load %arg0[%c0_1, %c0_2] : memref<20x32xf32, #tpu.memory_space<vmem>>, vector<20x32xf32>
    %cst = arith.constant dense<0.000000e+00> : vector<8x32xf32>
    %2 = tpu.matmul %0, %1, %cst {dimension_numbers = #tpu.dot_dimension_numbers<[1], [0], [0], [1], [0, 0, 1, 1], [], []>} : vector<8x20xf32>, vector<20x32xf32>, vector<8x32xf32> -> vector<8x32xf32>
    %c0_3 = arith.constant 0 : index
    %c0_4 = arith.constant 0 : index
    %3 = vector.load %arg2[%c0_3, %c0_4] : memref<8x1xf32, #tpu.memory_space<vmem>>, vector<8x1xf32>
    %c0_5 = arith.constant 0 : index
    %c0_6 = arith.constant 0 : index
    %4 = vector.load %arg3[%c0_5, %c0_6] : memref<8x1xf32, #tpu.memory_space<vmem>>, vector<8x1xf32>
    %cst_7 = arith.constant dense<0.000000e+00> : vector<8xf32>
    %5 = vector.multi_reduction <add>, %2, %cst_7 [1] : vector<8x32xf32> to vector<8xf32>
    %6 = vector.shape_cast %5 : vector<8xf32> to vector<8x1xf32>
    %cst_8 = arith.constant 3.125000e-02 : f32
    %7 = vector.broadcast %cst_8 : f32 to vector<8x1xf32>
    %8 = arith.mulf %6, %7 : vector<8x1xf32>
    %9 = vector.broadcast %8 : vector<8x1xf32> to vector<8x32xf32>
    %10 = arith.subf %2, %9 : vector<8x32xf32>
    %11 = arith.mulf %10, %10 : vector<8x32xf32>
    %cst_9 = arith.constant dense<0.000000e+00> : vector<8xf32>
    %12 = vector.multi_reduction <add>, %11, %cst_9 [1] : vector<8x32xf32> to vector<8xf32>
    %13 = vector.shape_cast %12 : vector<8xf32> to vector<8x1xf32>
    %cst_10 = arith.constant 3.125000e-02 : f32
    %14 = vector.broadcast %cst_10 : f32 to vector<8x1xf32>
    %15 = arith.mulf %13, %14 : vector<8x1xf32>
    %cst_11 = arith.constant 9.99999974E-6 : f32
    %16 = vector.broadcast %cst_11 : f32 to vector<8x1xf32>
    %17 = arith.addf %15, %16 : vector<8x1xf32>
    %18 = math.rsqrt %17 : vector<8x1xf32>
    %19 = arith.mulf %3, %18 : vector<8x1xf32>
    %20 = arith.mulf %8, %19 : vector<8x1xf32>
    %21 = arith.subf %4, %20 : vector<8x1xf32>
    %22 = vector.broadcast %19 : vector<8x1xf32> to vector<8x32xf32>
    %23 = arith.mulf %2, %22 : vector<8x32xf32>
    %24 = vector.broadcast %21 : vector<8x1xf32> to vector<8x32xf32>
    %25 = arith.addf %23, %24 : vector<8x32xf32>
    %cst_12 = arith.constant 0.000000e+00 : f32
    %26 = vector.broadcast %cst_12 : f32 to vector<8x32xf32>
    %27 = arith.maximumf %25, %26 : vector<8x32xf32>
    %28 = vector.extract_strided_slice %27 {offsets = [0, 0], sizes = [8, 2], strides = [1, 1]} : vector<8x32xf32> to vector<8x2xf32>
    %29 = vector.extract_strided_slice %27 {offsets = [0, 30], sizes = [8, 2], strides = [1, 1]} : vector<8x32xf32> to vector<8x2xf32>
    %30 = tpu.concatenate %28, %28, %27, %29, %29 in 1 : vector<8x2xf32>, vector<8x2xf32>, vector<8x32xf32>, vector<8x2xf32>, vector<8x2xf32> -> vector<8x40xf32>
    %c0_13 = arith.constant 0 : index
    %c0_14 = arith.constant 0 : index
    %c0_15 = arith.constant 0 : index
    %31 = vector.load %arg4[%c0_13, %c0_14, %c0_15] : memref<5x8x8xf32, #tpu.memory_space<vmem>>, vector<1x8x8xf32>
    %32 = vector.shape_cast %31 : vector<1x8x8xf32> to vector<8x8xf32>
    %33 = vector.extract_strided_slice %30 {offsets = [0, 0], sizes = [8, 32], strides = [1, 1]} : vector<8x40xf32> to vector<8x32xf32>
    %cst_16 = arith.constant dense<0.000000e+00> : vector<8x32xf32>
    %34 = tpu.matmul %32, %33, %cst_16 {dimension_numbers = #tpu.dot_dimension_numbers<[1], [0], [0], [1], [0, 0, 1, 1], [], []>} : vector<8x8xf32>, vector<8x32xf32>, vector<8x32xf32> -> vector<8x32xf32>
    %c1 = arith.constant 1 : index
    %c0_17 = arith.constant 0 : index
    %c0_18 = arith.constant 0 : index
    %35 = vector.load %arg4[%c1, %c0_17, %c0_18] : memref<5x8x8xf32, #tpu.memory_space<vmem>>, vector<1x8x8xf32>
    %36 = vector.shape_cast %35 : vector<1x8x8xf32> to vector<8x8xf32>
    %37 = vector.extract_strided_slice %30 {offsets = [0, 2], sizes = [8, 32], strides = [1, 1]} : vector<8x40xf32> to vector<8x32xf32>
    %cst_19 = arith.constant dense<0.000000e+00> : vector<8x32xf32>
    %38 = tpu.matmul %36, %37, %cst_19 {dimension_numbers = #tpu.dot_dimension_numbers<[1], [0], [0], [1], [0, 0, 1, 1], [], []>} : vector<8x8xf32>, vector<8x32xf32>, vector<8x32xf32> -> vector<8x32xf32>
    %39 = arith.addf %34, %38 : vector<8x32xf32>
    %c2 = arith.constant 2 : index
    %c0_20 = arith.constant 0 : index
    %c0_21 = arith.constant 0 : index
    %40 = vector.load %arg4[%c2, %c0_20, %c0_21] : memref<5x8x8xf32, #tpu.memory_space<vmem>>, vector<1x8x8xf32>
    %41 = vector.shape_cast %40 : vector<1x8x8xf32> to vector<8x8xf32>
    %42 = vector.extract_strided_slice %30 {offsets = [0, 4], sizes = [8, 32], strides = [1, 1]} : vector<8x40xf32> to vector<8x32xf32>
    %cst_22 = arith.constant dense<0.000000e+00> : vector<8x32xf32>
    %43 = tpu.matmul %41, %42, %cst_22 {dimension_numbers = #tpu.dot_dimension_numbers<[1], [0], [0], [1], [0, 0, 1, 1], [], []>} : vector<8x8xf32>, vector<8x32xf32>, vector<8x32xf32> -> vector<8x32xf32>
    %44 = arith.addf %39, %43 : vector<8x32xf32>
    %c3 = arith.constant 3 : index
    %c0_23 = arith.constant 0 : index
    %c0_24 = arith.constant 0 : index
    %45 = vector.load %arg4[%c3, %c0_23, %c0_24] : memref<5x8x8xf32, #tpu.memory_space<vmem>>, vector<1x8x8xf32>
    %46 = vector.shape_cast %45 : vector<1x8x8xf32> to vector<8x8xf32>
    %47 = vector.extract_strided_slice %30 {offsets = [0, 6], sizes = [8, 32], strides = [1, 1]} : vector<8x40xf32> to vector<8x32xf32>
    %cst_25 = arith.constant dense<0.000000e+00> : vector<8x32xf32>
    %48 = tpu.matmul %46, %47, %cst_25 {dimension_numbers = #tpu.dot_dimension_numbers<[1], [0], [0], [1], [0, 0, 1, 1], [], []>} : vector<8x8xf32>, vector<8x32xf32>, vector<8x32xf32> -> vector<8x32xf32>
    %49 = arith.addf %44, %48 : vector<8x32xf32>
    %c4 = arith.constant 4 : index
    %c0_26 = arith.constant 0 : index
    %c0_27 = arith.constant 0 : index
    %50 = vector.load %arg4[%c4, %c0_26, %c0_27] : memref<5x8x8xf32, #tpu.memory_space<vmem>>, vector<1x8x8xf32>
    %51 = vector.shape_cast %50 : vector<1x8x8xf32> to vector<8x8xf32>
    %52 = vector.extract_strided_slice %30 {offsets = [0, 8], sizes = [8, 32], strides = [1, 1]} : vector<8x40xf32> to vector<8x32xf32>
    %cst_28 = arith.constant dense<0.000000e+00> : vector<8x32xf32>
    %53 = tpu.matmul %51, %52, %cst_28 {dimension_numbers = #tpu.dot_dimension_numbers<[1], [0], [0], [1], [0, 0, 1, 1], [], []>} : vector<8x8xf32>, vector<8x32xf32>, vector<8x32xf32> -> vector<8x32xf32>
    %54 = arith.addf %49, %53 : vector<8x32xf32>
    %c0_29 = arith.constant 0 : index
    %c0_30 = arith.constant 0 : index
    %55 = vector.load %arg5[%c0_29, %c0_30] : memref<8x1xf32, #tpu.memory_space<vmem>>, vector<8x1xf32>
    %c0_31 = arith.constant 0 : index
    %c0_32 = arith.constant 0 : index
    %56 = vector.load %arg6[%c0_31, %c0_32] : memref<8x1xf32, #tpu.memory_space<vmem>>, vector<8x1xf32>
    %cst_33 = arith.constant dense<0.000000e+00> : vector<8xf32>
    %57 = vector.multi_reduction <add>, %54, %cst_33 [1] : vector<8x32xf32> to vector<8xf32>
    %58 = vector.shape_cast %57 : vector<8xf32> to vector<8x1xf32>
    %cst_34 = arith.constant 3.125000e-02 : f32
    %59 = vector.broadcast %cst_34 : f32 to vector<8x1xf32>
    %60 = arith.mulf %58, %59 : vector<8x1xf32>
    %61 = vector.broadcast %60 : vector<8x1xf32> to vector<8x32xf32>
    %62 = arith.subf %54, %61 : vector<8x32xf32>
    %63 = arith.mulf %62, %62 : vector<8x32xf32>
    %cst_35 = arith.constant dense<0.000000e+00> : vector<8xf32>
    %64 = vector.multi_reduction <add>, %63, %cst_35 [1] : vector<8x32xf32> to vector<8xf32>
    %65 = vector.shape_cast %64 : vector<8xf32> to vector<8x1xf32>
    %cst_36 = arith.constant 3.125000e-02 : f32
    %66 = vector.broadcast %cst_36 : f32 to vector<8x1xf32>
    %67 = arith.mulf %65, %66 : vector<8x1xf32>
    %cst_37 = arith.constant 9.99999974E-6 : f32
    %68 = vector.broadcast %cst_37 : f32 to vector<8x1xf32>
    %69 = arith.addf %67, %68 : vector<8x1xf32>
    %70 = math.rsqrt %69 : vector<8x1xf32>
    %71 = arith.mulf %55, %70 : vector<8x1xf32>
    %72 = arith.mulf %60, %71 : vector<8x1xf32>
    %73 = arith.subf %56, %72 : vector<8x1xf32>
    %74 = vector.broadcast %71 : vector<8x1xf32> to vector<8x32xf32>
    %75 = arith.mulf %54, %74 : vector<8x32xf32>
    %76 = vector.broadcast %73 : vector<8x1xf32> to vector<8x32xf32>
    %77 = arith.addf %75, %76 : vector<8x32xf32>
    %cst_38 = arith.constant 0.000000e+00 : f32
    %78 = vector.broadcast %cst_38 : f32 to vector<8x32xf32>
    %79 = arith.maximumf %77, %78 : vector<8x32xf32>
    %c0_39 = arith.constant 0 : index
    %c0_40 = arith.constant 0 : index
    %80 = vector.load %arg7[%c0_39, %c0_40] : memref<8x32xf32, #tpu.memory_space<vmem>>, vector<8x32xf32>
    tpu.vector_store %arg7[%c0_39, %c0_40], %79 {strides = array<i32>} : memref<8x32xf32, #tpu.memory_space<vmem>>, vector<8x32xf32>,
    return
  }
}

</mosaic_0001>

<llo_original>
// kernel: tpu_custom_call.1
$region0: #{tpu_custom_call.1}
  #allocation0 [shape = 'u32[]', space=smem, size = 0x4, offset = 0x4, fixed_abs, tag = 'smem constant byte address 0x4 - core index']
  #allocation1 [shape = 'u32[144,128]{1,0:T(1,128)}', space=vmem, size = 0x12000, scoped, tag = 'internal scratch']
  %s0 = inlined_call_operand.hbm [shape: f32[20,32], index: 0, kind: input, shape index: {}]
  %s1 = inlined_call_operand.vmem [shape: f32[8,20], index: 1, kind: input, shape index: {}]
  %s2 = inlined_call_operand.vmem [shape: f32[8,1], index: 2, kind: input, shape index: {}]
  %s3 = inlined_call_operand.vmem [shape: f32[8,1], index: 3, kind: input, shape index: {}]
  %s4 = inlined_call_operand.vmem [shape: f32[5,8,8], index: 4, kind: input, shape index: {}]
  %s5 = inlined_call_operand.vmem [shape: f32[8,1], index: 5, kind: input, shape index: {}]
  %s6 = inlined_call_operand.vmem [shape: f32[8,1], index: 6, kind: input, shape index: {}]
  %s7 = inlined_call_operand.hbm [shape: f32[8,32], index: 7, kind: output, shape index: {}]
  %s8 = sld [smem:[#allocation0]]
  $region42: #{tpu_custom_call.1} parent=0
    _
  %s10 = ssub.s32 1, %s8
  %s11 = scalar_select 0, %s10, %s8
  $region1: #{tpu_custom_call.1} parent=0
    #allocation2 [shape = 'u8[12288]{0}', space=vmem, size = 0x3000, scoped, tag = 'input window, operand 0, single buffered']
    #allocation3 [shape = 's32[1]{0}', space=sflag, size = 0x4, scoped, tag = 'scoped memory for tpu_custom_call.1']
    #allocation4 [shape = 's32[1]{0}', space=sflag, size = 0x4, scoped, tag = 'scoped memory for tpu_custom_call.1']
    #allocation5 [shape = 'u8[4096]{0}', space=vmem, size = 0x1000, scoped, tag = 'output window, operand 0, single buffered']
    %12 = vsyncpa [#allocation3], 0
    %13 = vsyncpa [#allocation4], 0
    // Predicated region
    $region2: #{tpu_custom_call.1} parent=1 // pred_check
      _
    $region3: #{tpu_custom_call.1} parent=1 // pred_check_branch
      %15 = sbr.rel (0) target = $region5
    $region4: #{tpu_custom_call.1} parent=1 // pred_region
      %s17 = ssub.s32 384, 384
      %18 = vsyncadd [#allocation3], %s17
      %s19 = sshll.u32 [#allocation2], 4
      %s20 = int_to_ptr.vmem [resolvable:$true] %s19
      %25 = dma.hbm_to_vmem [thread:$0]  %s0, 384, %s20, [#allocation3], 128, 128, 8
    $region5: #{tpu_custom_call.1} parent=1 // pred_fallthru
      _
    // Predicated region
    $region6: #{tpu_custom_call.1} parent=1 // pred_check
      _
    $region7: #{tpu_custom_call.1} parent=1 // pred_check_branch
      %27 = sbr.rel (0) target = $region9
    $region8: #{tpu_custom_call.1} parent=1 // pred_region
      _
    $region9: #{tpu_custom_call.1} parent=1 // pred_fallthru
      _
    // Predicated region
    $region10: #{tpu_custom_call.1} parent=1 // pred_check
      _
    $region11: #{tpu_custom_call.1} parent=1 // pred_check_branch
      %29 = sbr.rel (0) target = $region13
    $region12: #{tpu_custom_call.1} parent=1 // pred_region
      _
    $region13: #{tpu_custom_call.1} parent=1 // pred_fallthru
      _
    // Predicated region
    $region14: #{tpu_custom_call.1} parent=1 // pred_check
      _
    $region15: #{tpu_custom_call.1} parent=1 // pred_check_branch
      %31 = sbr.rel (0) target = $region17
    $region16: #{tpu_custom_call.1} parent=1 // pred_region
      _
    $region17: #{tpu_custom_call.1} parent=1 // pred_fallthru
      _
    // Predicated region
    $region18: #{tpu_custom_call.1} parent=1 // pred_check
      _
    $region19: #{tpu_custom_call.1} parent=1 // pred_check_branch
      %33 = sbr.rel (0) target = $region21
    $region20: #{tpu_custom_call.1} parent=1 // pred_region
      _
    $region21: #{tpu_custom_call.1} parent=1 // pred_fallthru
      _
    // Predicated region
    $region22: #{tpu_custom_call.1} parent=1 // pred_check
      _
    $region23: #{tpu_custom_call.1} parent=1 // pred_check_branch
      %35 = sbr.rel (0) target = $region25
    $region24: #{tpu_custom_call.1} parent=1 // pred_region
      _
    $region25: #{tpu_custom_call.1} parent=1 // pred_fallthru
      _
    // Predicated region
    $region26: #{tpu_custom_call.1} parent=1 // pred_check
      _
    $region27: #{tpu_custom_call.1} parent=1 // pred_check_branch
      %37 = sbr.rel (0) target = $region29
    $region28: #{tpu_custom_call.1} parent=1 // pred_region
      _
    $region29: #{tpu_custom_call.1} parent=1 // pred_fallthru
      _
    // Predicated region
    $region30: #{tpu_custom_call.1} parent=1 // pred_check
      _
    $region31: #{tpu_custom_call.1} parent=1 // pred_check_branch
      %39 = sbr.rel (0) target = $region33
    $region32: #{tpu_custom_call.1} parent=1 // pred_region
      %40 = dma.done [#allocation3], 384
    $region33: #{tpu_custom_call.1} parent=1 // pred_fallthru
      _
    %v41 = vld [vmem:[%s1] sm:$0xff]
    %v42 = vld [vmem:[#allocation2] sm:$0xff]
    %v43 = vld [vmem:[#allocation2 + $0x8] sm:$0xff]
    %v44 = vld [vmem:[#allocation2 + $0x10] sm:$0xf]
    %vm45 = vcmask 162816
    %v47 = vsel %vm45, %v41, 0
    %vm49 = vcmask 1043456
    %v51 = vsel %vm49, %v44, 0
    %53 = vmatprep.subr.mxu0 0.0
    %54 = vmatpush1.msra.mxu0 %v42
    %55 = vmatprep.subr.mxu0 0.0
    %56 = vmatpush1.msra.mxu0 %v43
    %57 = vmatprep.subr.mxu0 0.0
    %58 = vmatpush1.msra.mxu0 %v51
    %59 = vmatprep.subr.mxu0 0.0
    %60 = vmatpush1.msra.mxu0 0.0
    %61 = vmatprep.subr.mxu0 0.0
    %62 = vmatpush1.msra.mxu0 0.0
    %63 = vmatprep.subr.mxu0 0.0
    %64 = vmatpush1.msra.mxu0 0.0
    %65 = vmatprep.subr.mxu0 0.0
    %66 = vmatpush1.msra.mxu0 0.0
    %67 = vmatprep.subr.mxu0 0.0
    %68 = vmatpush1.msra.mxu0 0.0
    %69 = vmatprep.subr.mxu0 0.0
    %70 = vmatpush1.msra.mxu0 0.0
    %71 = vmatprep.subr.mxu0 0.0
    %72 = vmatpush1.msra.mxu0 0.0
    %73 = vmatprep.subr.mxu0 0.0
    %74 = vmatpush1.msra.mxu0 0.0
    %75 = vmatprep.subr.mxu0 0.0
    %76 = vmatpush1.msra.mxu0 0.0
    %77 = vmatprep.subr.mxu0 0.0
    %78 = vmatpush1.msra.mxu0 0.0
    %79 = vmatprep.subr.mxu0 0.0
    %80 = vmatpush1.msra.mxu0 0.0
    %81 = vmatprep.subr.mxu0 0.0
    %82 = vmatpush1.msra.mxu0 0.0
    %83 = vmatprep.subr.mxu0 0.0
    %84 = vmatpush1.msra.mxu0 0.0
    %85 = vmatprep.subr.mxu0 0.0
    %86 = vmatpush1.msra.mxu0 0.0
    %87 = vmatprep.subr.mxu0 0.0
    %88 = vmatpush1.msra.mxu0 0.0
    %89 = vmatprep.subr.mxu0 0.0
    %90 = vmatpush1.msra.mxu0 0.0
    %91 = vmatprep.subr.mxu0 0.0
    %92 = vmatpush1.msra.mxu0 0.0
    %93 = vmatprep.subr.mxu0 0.0
    %94 = vmatpush1.msra.mxu0 0.0
    %95 = vmatprep.subr.mxu0 0.0
    %96 = vmatpush1.msra.mxu0 0.0
    %97 = vmatprep.subr.mxu0 0.0
    %98 = vmatpush1.msra.mxu0 0.0
    %99 = vmatprep.subr.mxu0 0.0
    %100 = vmatpush1.msra.mxu0 0.0
    %101 = vmatprep.subr.mxu0 0.0
    %102 = vmatpush1.msra.mxu0 0.0
    %103 = vmatprep.subr.mxu0 0.0
    %104 = vmatpush1.msra.mxu0 0.0
    %105 = vmatprep.subr.mxu0 0.0
    %106 = vmatpush1.msra.mxu0 0.0
    %107 = vmatprep.subr.mxu0 0.0
    %108 = vmatpush1.msra.mxu0 0.0
    %109 = vmatprep.subr.mxu0 0.0
    %110 = vmatpush1.msra.mxu0 0.0
    %111 = vmatprep.subr.mxu0 0.0
    %112 = vmatpush1.msra.mxu0 0.0
    %113 = vmatprep.subr.mxu0 0.0
    %114 = vmatpush1.msra.mxu0 0.0
    %115 = vmatprep.subr.mxu0 0.0
    %116 = vmatpush1.msra.mxu0 0.0
    %117 = vmatprep.mubr.f32.mxu0 0.0
    %118 = vmatmul.mubr.f32.gmra.mrb[0].mxu0 %v47
    %v119 = vpop.f32.mrb[0].mxu0
    %v120 = vadd.f32 0.0, %v119
    %v121 = vpop.f32.mrb[0].mxu0
    %122 = vdwg.mxu0
    %v123 = vld [vmem:[%s2] sm:$0xff]
    %v124 = vld [vmem:[%s3] sm:$0xff]
    %vm125 = vcmask 261120
    %v126 = vsel %vm125, %v120, 0.0
    %127 = vadd.xlane.f32.xlu0 %v126
    %v128 = vpop.xlane.xlu0 %127
    %v129 = vmul.f32 %v128, 0.03125
    %v130 = vsub.f32 %v120, %v129
    %v131 = vmul.f32 %v130, %v130
    %v132 = vsel %vm125, %v131, 0.0
    %133 = vadd.xlane.f32.xlu0 %v132
    %v134 = vpop.xlane.xlu0 %133
    %v135 = vmul.f32 %v134, 0.03125
    %v136 = vadd.f32 %v135, 1e-05
    %v137 = vrsqrt.pop %v136
    %v138 = vmul.f32 %v123, %v137
    %v139 = vmul.f32 %v129, %v138
    %v140 = vsub.f32 %v124, %v139
    %142 = vset.pattern.permute.xlu0 0
    %143 = vperm.xlu0 %142, %v138
    %v144 = vpop.permute.xlu0 %143
    %v146 = vmul.f32 %v120, %v144
    %148 = vset.pattern.permute.xlu0 0
    %149 = vperm.xlu0 %148, %v140
    %v150 = vpop.permute.xlu0 %149
    %v152 = vadd.f32 %v146, %v150
    %v153 = vmax.f32 %v152, 0.0
    %155 = vrot.lane.b32.xlu0 %v153, 2
    %v156 = vpop.permute.xlu0 %155
    %158 = vrot.lane.b32.xlu0 %v153, 4
    %v159 = vpop.permute.xlu0 %158
    %161 = vrot.lane.b32.xlu0 %v153, 6
    %v162 = vpop.permute.xlu0 %161
    %164 = vrot.lane.b32.xlu0 %v153, 8
    %v165 = vpop.permute.xlu0 %164
    %vm167 = vcmask 15360
    %v168 = vsel %vm167, %v153, %v156
    %vm169 = vcmask 31744
    %v170 = vsel %vm169, %v168, %v159
    %vm171 = vcmask 293888
    %v172 = vsel %vm171, %v170, %v162
    %vm173 = vcmask 310272
    %v174 = vsel %vm173, %v172, %v165
    %v175 = vld [vmem:[%s4] sm:$0xff]
    %s176 = scalar_lea.vmem %s4, 8
    %v177 = vld [vmem:[%s176] sm:$0xff]
    %179 = vrot.lane.b32.xlu0 %v174, 126
    %v180 = vpop.permute.xlu0 %179
    %vm182 = vcmask 64512
    %v184 = vsel %vm182, %v177, 0
    %186 = vmatprep.subr.mxu0 0.0
    %187 = vmatpush1.msra.mxu0 %v180
    %188 = vmatprep.subr.mxu0 0.0
    %189 = vmatpush1.msra.mxu0 0.0
    %190 = vmatprep.subr.mxu0 0.0
    %191 = vmatpush1.msra.mxu0 0.0
    %192 = vmatprep.subr.mxu0 0.0
    %193 = vmatpush1.msra.mxu0 0.0
    %194 = vmatprep.subr.mxu0 0.0
    %195 = vmatpush1.msra.mxu0 0.0
    %196 = vmatprep.subr.mxu0 0.0
    %197 = vmatpush1.msra.mxu0 0.0
    %198 = vmatprep.subr.mxu0 0.0
    %199 = vmatpush1.msra.mxu0 0.0
    %200 = vmatprep.subr.mxu0 0.0
    %201 = vmatpush1.msra.mxu0 0.0
    %202 = vmatprep.subr.mxu0 0.0
    %203 = vmatpush1.msra.mxu0 0.0
    %204 = vmatprep.subr.mxu0 0.0
    %205 = vmatpush1.msra.mxu0 0.0
    %206 = vmatprep.subr.mxu0 0.0
    %207 = vmatpush1.msra.mxu0 0.0
    %208 = vmatprep.subr.mxu0 0.0
    %209 = vmatpush1.msra.mxu0 0.0
    %210 = vmatprep.subr.mxu0 0.0
    %211 = vmatpush1.msra.mxu0 0.0
    %212 = vmatprep.subr.mxu0 0.0
    %213 = vmatpush1.msra.mxu0 0.0
    %214 = vmatprep.subr.mxu0 0.0
    %215 = vmatpush1.msra.mxu0 0.0
    %216 = vmatprep.subr.mxu0 0.0
    %217 = vmatpush1.msra.mxu0 0.0
    %218 = vmatprep.subr.mxu0 0.0
    %219 = vmatpush1.msra.mxu0 0.0
    %220 = vmatprep.subr.mxu0 0.0
    %221 = vmatpush1.msra.mxu0 0.0
    %222 = vmatprep.subr.mxu0 0.0
    %223 = vmatpush1.msra.mxu0 0.0
    %224 = vmatprep.subr.mxu0 0.0
    %225 = vmatpush1.msra.mxu0 0.0
    %226 = vmatprep.subr.mxu0 0.0
    %227 = vmatpush1.msra.mxu0 0.0
    %228 = vmatprep.subr.mxu0 0.0
    %229 = vmatpush1.msra.mxu0 0.0
    %230 = vmatprep.subr.mxu0 0.0
    %231 = vmatpush1.msra.mxu0 0.0
    %232 = vmatprep.subr.mxu0 0.0
    %233 = vmatpush1.msra.mxu0 0.0
    %234 = vmatprep.subr.mxu0 0.0
    %235 = vmatpush1.msra.mxu0 0.0
    %236 = vmatprep.subr.mxu0 0.0
    %237 = vmatpush1.msra.mxu0 0.0
    %238 = vmatprep.subr.mxu0 0.0
    %239 = vmatpush1.msra.mxu0 0.0
    %240 = vmatprep.subr.mxu0 0.0
    %241 = vmatpush1.msra.mxu0 0.0
    %242 = vmatprep.subr.mxu0 0.0
    %243 = vmatpush1.msra.mxu0 0.0
    %244 = vmatprep.subr.mxu0 0.0
    %245 = vmatpush1.msra.mxu0 0.0
    %246 = vmatprep.subr.mxu0 0.0
    %247 = vmatpush1.msra.mxu0 0.0
    %248 = vmatprep.subr.mxu0 0.0
    %249 = vmatpush1.msra.mxu0 0.0
    %250 = vmatprep.mubr.f32.mxu0 0.0
    %251 = vmatmul.mubr.f32.gmra.mrb[0].mxu0 %v184
    %v252 = vpop.f32.mrb[0].mxu0
    %v253 = vadd.f32 0.0, %v252
    %v254 = vpop.f32.mrb[0].mxu0
    %255 = vdwg.mxu0
    %v257 = vsel %vm182, %v175, 0
    %259 = vmatprep.subr.mxu0 0.0
    %260 = vmatpush1.msra.mxu0 %v174
    %261 = vmatprep.subr.mxu0 0.0
    %262 = vmatpush1.msra.mxu0 0.0
    %263 = vmatprep.subr.mxu0 0.0
    %264 = vmatpush1.msra.mxu0 0.0
    %265 = vmatprep.subr.mxu0 0.0
    %266 = vmatpush1.msra.mxu0 0.0
    %267 = vmatprep.subr.mxu0 0.0
    %268 = vmatpush1.msra.mxu0 0.0
    %269 = vmatprep.subr.mxu0 0.0
    %270 = vmatpush1.msra.mxu0 0.0
    %271 = vmatprep.subr.mxu0 0.0
    %272 = vmatpush1.msra.mxu0 0.0
    %273 = vmatprep.subr.mxu0 0.0
    %274 = vmatpush1.msra.mxu0 0.0
    %275 = vmatprep.subr.mxu0 0.0
    %276 = vmatpush1.msra.mxu0 0.0
    %277 = vmatprep.subr.mxu0 0.0
    %278 = vmatpush1.msra.mxu0 0.0
    %279 = vmatprep.subr.mxu0 0.0
    %280 = vmatpush1.msra.mxu0 0.0
    %281 = vmatprep.subr.mxu0 0.0
    %282 = vmatpush1.msra.mxu0 0.0
    %283 = vmatprep.subr.mxu0 0.0
    %284 = vmatpush1.msra.mxu0 0.0
    %285 = vmatprep.subr.mxu0 0.0
    %286 = vmatpush1.msra.mxu0 0.0
    %287 = vmatprep.subr.mxu0 0.0
    %288 = vmatpush1.msra.mxu0 0.0
    %289 = vmatprep.subr.mxu0 0.0
    %290 = vmatpush1.msra.mxu0 0.0
    %291 = vmatprep.subr.mxu0 0.0
    %292 = vmatpush1.msra.mxu0 0.0
    %293 = vmatprep.subr.mxu0 0.0
    %294 = vmatpush1.msra.mxu0 0.0
    %295 = vmatprep.subr.mxu0 0.0
    %296 = vmatpush1.msra.mxu0 0.0
    %297 = vmatprep.subr.mxu0 0.0
    %298 = vmatpush1.msra.mxu0 0.0
    %299 = vmatprep.subr.mxu0 0.0
    %300 = vmatpush1.msra.mxu0 0.0
    %301 = vmatprep.subr.mxu0 0.0
    %302 = vmatpush1.msra.mxu0 0.0
    %303 = vmatprep.subr.mxu0 0.0
    %304 = vmatpush1.msra.mxu0 0.0
    %305 = vmatprep.subr.mxu0 0.0
    %306 = vmatpush1.msra.mxu0 0.0
    %307 = vmatprep.subr.mxu0 0.0
    %308 = vmatpush1.msra.mxu0 0.0
    %309 = vmatprep.subr.mxu0 0.0
    %310 = vmatpush1.msra.mxu0 0.0
    %311 = vmatprep.subr.mxu0 0.0
    %312 = vmatpush1.msra.mxu0 0.0
    %313 = vmatprep.subr.mxu0 0.0
    %314 = vmatpush1.msra.mxu0 0.0
    %315 = vmatprep.subr.mxu0 0.0
    %316 = vmatpush1.msra.mxu0 0.0
    %317 = vmatprep.subr.mxu0 0.0
    %318 = vmatpush1.msra.mxu0 0.0
    %319 = vmatprep.subr.mxu0 0.0
    %320 = vmatpush1.msra.mxu0 0.0
    %321 = vmatprep.subr.mxu0 0.0
    %322 = vmatpush1.msra.mxu0 0.0
    %323 = vmatprep.mubr.f32.mxu0 0.0
    %324 = vmatmul.mubr.f32.gmra.mrb[0].mxu0 %v257
    %v325 = vpop.f32.mrb[0].mxu0
    %v326 = vadd.f32 %v253, %v325
    %v327 = vpop.f32.mrb[0].mxu0
    %328 = vdwg.mxu0
    %s329 = scalar_lea.vmem %s4, 16
    %v330 = vld [vmem:[%s329] sm:$0xff]
    %331 = vrot.lane.b32.xlu0 %v174, 124
    %v332 = vpop.permute.xlu0 %331
    %v335 = vsel %vm182, %v330, 0
    %337 = vmatprep.subr.mxu0 0.0
    %338 = vmatpush1.msra.mxu0 %v332
    %339 = vmatprep.subr.mxu0 0.0
    %340 = vmatpush1.msra.mxu0 0.0
    %341 = vmatprep.subr.mxu0 0.0
    %342 = vmatpush1.msra.mxu0 0.0
    %343 = vmatprep.subr.mxu0 0.0
    %344 = vmatpush1.msra.mxu0 0.0
    %345 = vmatprep.subr.mxu0 0.0
    %346 = vmatpush1.msra.mxu0 0.0
    %347 = vmatprep.subr.mxu0 0.0
    %348 = vmatpush1.msra.mxu0 0.0
    %349 = vmatprep.subr.mxu0 0.0
    %350 = vmatpush1.msra.mxu0 0.0
    %351 = vmatprep.subr.mxu0 0.0
    %352 = vmatpush1.msra.mxu0 0.0
    %353 = vmatprep.subr.mxu0 0.0
    %354 = vmatpush1.msra.mxu0 0.0
    %355 = vmatprep.subr.mxu0 0.0
    %356 = vmatpush1.msra.mxu0 0.0
    %357 = vmatprep.subr.mxu0 0.0
    %358 = vmatpush1.msra.mxu0 0.0
    %359 = vmatprep.subr.mxu0 0.0
    %360 = vmatpush1.msra.mxu0 0.0
    %361 = vmatprep.subr.mxu0 0.0
    %362 = vmatpush1.msra.mxu0 0.0
    %363 = vmatprep.subr.mxu0 0.0
    %364 = vmatpush1.msra.mxu0 0.0
    %365 = vmatprep.subr.mxu0 0.0
    %366 = vmatpush1.msra.mxu0 0.0
    %367 = vmatprep.subr.mxu0 0.0
    %368 = vmatpush1.msra.mxu0 0.0
    %369 = vmatprep.subr.mxu0 0.0
    %370 = vmatpush1.msra.mxu0 0.0
    %371 = vmatprep.subr.mxu0 0.0
    %372 = vmatpush1.msra.mxu0 0.0
    %373 = vmatprep.subr.mxu0 0.0
    %374 = vmatpush1.msra.mxu0 0.0
    %375 = vmatprep.subr.mxu0 0.0
    %376 = vmatpush1.msra.mxu0 0.0
    %377 = vmatprep.subr.mxu0 0.0
    %378 = vmatpush1.msra.mxu0 0.0
    %379 = vmatprep.subr.mxu0 0.0
    %380 = vmatpush1.msra.mxu0 0.0
    %381 = vmatprep.subr.mxu0 0.0
    %382 = vmatpush1.msra.mxu0 0.0
    %383 = vmatprep.subr.mxu0 0.0
    %384 = vmatpush1.msra.mxu0 0.0
    %385 = vmatprep.subr.mxu0 0.0
    %386 = vmatpush1.msra.mxu0 0.0
    %387 = vmatprep.subr.mxu0 0.0
    %388 = vmatpush1.msra.mxu0 0.0
    %389 = vmatprep.subr.mxu0 0.0
    %390 = vmatpush1.msra.mxu0 0.0
    %391 = vmatprep.subr.mxu0 0.0
    %392 = vmatpush1.msra.mxu0 0.0
    %393 = vmatprep.subr.mxu0 0.0
    %394 = vmatpush1.msra.mxu0 0.0
    %395 = vmatprep.subr.mxu0 0.0
    %396 = vmatpush1.msra.mxu0 0.0
    %397 = vmatprep.subr.mxu0 0.0
    %398 = vmatpush1.msra.mxu0 0.0
    %399 = vmatprep.subr.mxu0 0.0
    %400 = vmatpush1.msra.mxu0 0.0
    %401 = vmatprep.mubr.f32.mxu0 0.0
    %402 = vmatmul.mubr.f32.gmra.mrb[0].mxu0 %v335
    %v403 = vpop.f32.mrb[0].mxu0
    %v404 = vadd.f32 0.0, %v403
    %v405 = vpop.f32.mrb[0].mxu0
    %406 = vdwg.mxu0
    %v407 = vadd.f32 %v326, %v404
    %s408 = scalar_lea.vmem %s4, 24
    %v409 = vld [vmem:[%s408] sm:$0xff]
    %410 = vrot.lane.b32.xlu0 %v174, 122
    %v411 = vpop.permute.xlu0 %410
    %v414 = vsel %vm182, %v409, 0
    %416 = vmatprep.subr.mxu0 0.0
    %417 = vmatpush1.msra.mxu0 %v411
    %418 = vmatprep.subr.mxu0 0.0
    %419 = vmatpush1.msra.mxu0 0.0
    %420 = vmatprep.subr.mxu0 0.0
    %421 = vmatpush1.msra.mxu0 0.0
    %422 = vmatprep.subr.mxu0 0.0
    %423 = vmatpush1.msra.mxu0 0.0
    %424 = vmatprep.subr.mxu0 0.0
    %425 = vmatpush1.msra.mxu0 0.0
    %426 = vmatprep.subr.mxu0 0.0
    %427 = vmatpush1.msra.mxu0 0.0
    %428 = vmatprep.subr.mxu0 0.0
    %429 = vmatpush1.msra.mxu0 0.0
    %430 = vmatprep.subr.mxu0 0.0
    %431 = vmatpush1.msra.mxu0 0.0
    %432 = vmatprep.subr.mxu0 0.0
    %433 = vmatpush1.msra.mxu0 0.0
    %434 = vmatprep.subr.mxu0 0.0
    %435 = vmatpush1.msra.mxu0 0.0
    %436 = vmatprep.subr.mxu0 0.0
    %437 = vmatpush1.msra.mxu0 0.0
    %438 = vmatprep.subr.mxu0 0.0
    %439 = vmatpush1.msra.mxu0 0.0
    %440 = vmatprep.subr.mxu0 0.0
    %441 = vmatpush1.msra.mxu0 0.0
    %442 = vmatprep.subr.mxu0 0.0
    %443 = vmatpush1.msra.mxu0 0.0
    %444 = vmatprep.subr.mxu0 0.0
    %445 = vmatpush1.msra.mxu0 0.0
    %446 = vmatprep.subr.mxu0 0.0
    %447 = vmatpush1.msra.mxu0 0.0
    %448 = vmatprep.subr.mxu0 0.0
    %449 = vmatpush1.msra.mxu0 0.0
    %450 = vmatprep.subr.mxu0 0.0
    %451 = vmatpush1.msra.mxu0 0.0
    %452 = vmatprep.subr.mxu0 0.0
    %453 = vmatpush1.msra.mxu0 0.0
    %454 = vmatprep.subr.mxu0 0.0
    %455 = vmatpush1.msra.mxu0 0.0
    %456 = vmatprep.subr.mxu0 0.0
    %457 = vmatpush1.msra.mxu0 0.0
    %458 = vmatprep.subr.mxu0 0.0
    %459 = vmatpush1.msra.mxu0 0.0
    %460 = vmatprep.subr.mxu0 0.0
    %461 = vmatpush1.msra.mxu0 0.0
    %462 = vmatprep.subr.mxu0 0.0
    %463 = vmatpush1.msra.mxu0 0.0
    %464 = vmatprep.subr.mxu0 0.0
    %465 = vmatpush1.msra.mxu0 0.0
    %466 = vmatprep.subr.mxu0 0.0
    %467 = vmatpush1.msra.mxu0 0.0
    %468 = vmatprep.subr.mxu0 0.0
    %469 = vmatpush1.msra.mxu0 0.0
    %470 = vmatprep.subr.mxu0 0.0
    %471 = vmatpush1.msra.mxu0 0.0
    %472 = vmatprep.subr.mxu0 0.0
    %473 = vmatpush1.msra.mxu0 0.0
    %474 = vmatprep.subr.mxu0 0.0
    %475 = vmatpush1.msra.mxu0 0.0
    %476 = vmatprep.subr.mxu0 0.0
    %477 = vmatpush1.msra.mxu0 0.0
    %478 = vmatprep.subr.mxu0 0.0
    %479 = vmatpush1.msra.mxu0 0.0
    %480 = vmatprep.mubr.f32.mxu0 0.0
    %481 = vmatmul.mubr.f32.gmra.mrb[0].mxu0 %v414
    %v482 = vpop.f32.mrb[0].mxu0
    %v483 = vadd.f32 0.0, %v482
    %v484 = vpop.f32.mrb[0].mxu0
    %485 = vdwg.mxu0
    %v486 = vadd.f32 %v407, %v483
    %s487 = scalar_lea.vmem %s4, 32
    %v488 = vld [vmem:[%s487] sm:$0xff]
    %489 = vrot.lane.b32.xlu0 %v174, 120
    %v490 = vpop.permute.xlu0 %489
    %v493 = vsel %vm182, %v488, 0
    %495 = vmatprep.subr.mxu0 0.0
    %496 = vmatpush1.msra.mxu0 %v490
    %497 = vmatprep.subr.mxu0 0.0
    %498 = vmatpush1.msra.mxu0 0.0
    %499 = vmatprep.subr.mxu0 0.0
    %500 = vmatpush1.msra.mxu0 0.0
    %501 = vmatprep.subr.mxu0 0.0
    %502 = vmatpush1.msra.mxu0 0.0
    %503 = vmatprep.subr.mxu0 0.0
    %504 = vmatpush1.msra.mxu0 0.0
    %505 = vmatprep.subr.mxu0 0.0
    %506 = vmatpush1.msra.mxu0 0.0
    %507 = vmatprep.subr.mxu0 0.0
    %508 = vmatpush1.msra.mxu0 0.0
    %509 = vmatprep.subr.mxu0 0.0
    %510 = vmatpush1.msra.mxu0 0.0
    %511 = vmatprep.subr.mxu0 0.0
    %512 = vmatpush1.msra.mxu0 0.0
    %513 = vmatprep.subr.mxu0 0.0
    %514 = vmatpush1.msra.mxu0 0.0
    %515 = vmatprep.subr.mxu0 0.0
    %516 = vmatpush1.msra.mxu0 0.0
    %517 = vmatprep.subr.mxu0 0.0
    %518 = vmatpush1.msra.mxu0 0.0
    %519 = vmatprep.subr.mxu0 0.0
    %520 = vmatpush1.msra.mxu0 0.0
    %521 = vmatprep.subr.mxu0 0.0
    %522 = vmatpush1.msra.mxu0 0.0
    %523 = vmatprep.subr.mxu0 0.0
    %524 = vmatpush1.msra.mxu0 0.0
    %525 = vmatprep.subr.mxu0 0.0
    %526 = vmatpush1.msra.mxu0 0.0
    %527 = vmatprep.subr.mxu0 0.0
    %528 = vmatpush1.msra.mxu0 0.0
    %529 = vmatprep.subr.mxu0 0.0
    %530 = vmatpush1.msra.mxu0 0.0
    %531 = vmatprep.subr.mxu0 0.0
    %532 = vmatpush1.msra.mxu0 0.0
    %533 = vmatprep.subr.mxu0 0.0
    %534 = vmatpush1.msra.mxu0 0.0
    %535 = vmatprep.subr.mxu0 0.0
    %536 = vmatpush1.msra.mxu0 0.0
    %537 = vmatprep.subr.mxu0 0.0
    %538 = vmatpush1.msra.mxu0 0.0
    %539 = vmatprep.subr.mxu0 0.0
    %540 = vmatpush1.msra.mxu0 0.0
    %541 = vmatprep.subr.mxu0 0.0
    %542 = vmatpush1.msra.mxu0 0.0
    %543 = vmatprep.subr.mxu0 0.0
    %544 = vmatpush1.msra.mxu0 0.0
    %545 = vmatprep.subr.mxu0 0.0
    %546 = vmatpush1.msra.mxu0 0.0
    %547 = vmatprep.subr.mxu0 0.0
    %548 = vmatpush1.msra.mxu0 0.0
    %549 = vmatprep.subr.mxu0 0.0
    %550 = vmatpush1.msra.mxu0 0.0
    %551 = vmatprep.subr.mxu0 0.0
    %552 = vmatpush1.msra.mxu0 0.0
    %553 = vmatprep.subr.mxu0 0.0
    %554 = vmatpush1.msra.mxu0 0.0
    %555 = vmatprep.subr.mxu0 0.0
    %556 = vmatpush1.msra.mxu0 0.0
    %557 = vmatprep.subr.mxu0 0.0
    %558 = vmatpush1.msra.mxu0 0.0
    %559 = vmatprep.mubr.f32.mxu0 0.0
    %560 = vmatmul.mubr.f32.gmra.mrb[0].mxu0 %v493
    %v561 = vpop.f32.mrb[0].mxu0
    %v562 = vadd.f32 0.0, %v561
    %v563 = vpop.f32.mrb[0].mxu0
    %564 = vdwg.mxu0
    %v565 = vadd.f32 %v486, %v562
    %v566 = vld [vmem:[%s5] sm:$0xff]
    %v567 = vld [vmem:[%s6] sm:$0xff]
    %v568 = vsel %vm125, %v565, 0.0
    %569 = vadd.xlane.f32.xlu0 %v568
    %v570 = vpop.xlane.xlu0 %569
    %v571 = vmul.f32 %v570, 0.03125
    %v572 = vsub.f32 %v565, %v571
    %v573 = vmul.f32 %v572, %v572
    %v574 = vsel %vm125, %v573, 0.0
    %575 = vadd.xlane.f32.xlu0 %v574
    %v576 = vpop.xlane.xlu0 %575
    %v577 = vmul.f32 %v576, 0.03125
    %v578 = vadd.f32 %v577, 1e-05
    %v579 = vrsqrt.pop %v578
    %v580 = vmul.f32 %v566, %v579
    %v581 = vmul.f32 %v571, %v580
    %v582 = vsub.f32 %v567, %v581
    %584 = vset.pattern.permute.xlu0 0
    %585 = vperm.xlu0 %584, %v580
    %v586 = vpop.permute.xlu0 %585
    %v588 = vmul.f32 %v565, %v586
    %590 = vset.pattern.permute.xlu0 0
    %591 = vperm.xlu0 %590, %v582
    %v592 = vpop.permute.xlu0 %591
    %v594 = vadd.f32 %v588, %v592
    %v595 = vmax.f32 %v594, 0.0
    %596 = vst.msk [vmem:[#allocation5] sm:$0xff] %vm125, %v595
    // Predicated region
    $region34: #{tpu_custom_call.1} parent=1 // pred_check
      _
    $region35: #{tpu_custom_call.1} parent=1 // pred_check_branch
      %598 = sbr.rel (0) target = $region37
    $region36: #{tpu_custom_call.1} parent=1 // pred_region
      %s600 = ssub.s32 128, 128
      %601 = vsyncadd [#allocation4], %s600
      %s603 = sshll.u32 [#allocation5], 4
      %s604 = int_to_ptr.vmem [resolvable:$true] %s603
      %606 = dma.vmem_to_hbm [thread:$0]  %s604, 128, %s7, [#allocation4]
    $region37: #{tpu_custom_call.1} parent=1 // pred_fallthru
      _
    // Predicated region
    $region38: #{tpu_custom_call.1} parent=1 // pred_check
      _
    $region39: #{tpu_custom_call.1} parent=1 // pred_check_branch
      %608 = sbr.rel (0) target = $region41
    $region40: #{tpu_custom_call.1} parent=1 // pred_region
      %609 = dma.done [#allocation4], 128
    $region41: #{tpu_custom_call.1} parent=1 // pred_fallthru
      _
    %610 = vsyncpa [#allocation3], 1
    %611 = vsyncpa [#allocation4], 1

</llo_original>
